<compile_context>
chip_gen: v5e
topology: v5e:2x2
jax: 0.10.0
libtpu: 0.0.40
codegen_flags: <defaults>
</compile_context>

<pallas_src>
import jax
import jax.numpy as jnp
import numpy as np
from jax.experimental import pallas as pl
from jax.experimental.pallas import tpu as pltpu

# Use full-f32 matmul precision everywhere (reference and kernel trace) so the
# correctness check is only sensitive to the (benign) FP reassociation.
jax.config.update("jax_default_matmul_precision", "highest")


def lmu_kernel(xt_ref, w_ref, b_ref, g_ref, h_ref):
    """Entire LMUCell forward in two MXU matmuls, all intermediates lane-dense.

    xt_ref : (I, seq*batch)  input, time-major along lanes (lane-dense, K>=128)
    w_ref  : (H, I)          Linear weight (we compute W @ X^T, so no W.T)
    b_ref  : (H, 1)          Linear bias as a column (lane-broadcast)
    g_ref  : (H, seq*I)      Gcat: block t = C @ A^(seq-1-t) @ B (+ D in last)
    h_ref  : (N, N)          final hidden state (shape PyTorch returns here)
    """
    # Lane-dense input projection: U^T[:, t*B + n] = tanh(W @ x[n, t, :] + b).
    ut = jnp.tanh(
        jnp.dot(w_ref[...], xt_ref[...], preferred_element_type=jnp.float32)
        + b_ref[...])                                           # (H, seq*B)

    # Whole recurrence + output projection collapsed into ONE K=seq*B matmul:
    #   h[i, j] = sum_m Gcat[i, m] * U^T[j, m]
    # (contract the last dim of both operands — the classic q @ k^T pattern).
    h_pre = jax.lax.dot_general(
        g_ref[...], ut, (((1,), (1,)), ((), ())),
        preferred_element_type=jnp.float32)                     # (N, N)
    h_ref[...] = jnp.tanh(h_pre)                                # single store


@jax.jit
def lmu_cell_forward(x, A, B, C, D, W, b):
    """x: (batch, seq, input) float32.  Returns h with the shape PyTorch would
    return under the module's (degenerate) shape constraints: (N, N)."""
    batch, seq, input_size = x.shape
    memory = A.shape[0]
    hidden = C.shape[0]
    assert batch == input_size == hidden == memory, (
        "LMUCell.forward is only shape-consistent when "
        "batch == input == hidden == memory")
    assert batch % 8 == 0, "sublane alignment: batch must be a multiple of 8"
    N = batch

    # ---- weight-only folding (data-independent; cacheable across calls) ----
    # CAB[p] = C @ A^p @ B ; Gcat time-block t = CAB[seq-1-t], D added to last.
    CAB = []
    Mt = B
    for _ in range(seq):
        CAB.append(C @ Mt)
        Mt = A @ Mt
    blocks = [CAB[seq - 1 - t] for t in range(seq)]
    blocks[-1] = blocks[-1] + D
    gcat = jnp.concatenate(blocks, axis=1)                      # (H, seq*I)

    # One transpose that produces the lane-dense X^T layout the kernel needs:
    # xt[i, t*batch + n] = x[n, t, i].
    xt = jnp.transpose(x, (2, 1, 0)).reshape(input_size, seq * batch)
    b_col = b.reshape(hidden, 1)

    flops = (2 * hidden * input_size * seq * batch
             + 2 * hidden * hidden * seq * input_size)
    transcendentals = hidden * seq * batch + hidden * hidden
    bytes_accessed = 4 * (xt.size + W.size + b_col.size + gcat.size + N * N)

    vmem = pl.BlockSpec(memory_space=pltpu.MemorySpace.VMEM)
    return pl.pallas_call(
        lmu_kernel,
        out_shape=jax.ShapeDtypeStruct((N, N), jnp.float32),
        in_specs=[vmem] * 4,
        out_specs=vmem,
        cost_estimate=pl.CostEstimate(flops=flops,
                                      transcendentals=transcendentals,
                                      bytes_accessed=bytes_accessed),
    )(xt, W, b_col, gcat)


def lmu_cell_reference(x, A, B, C, D, W, b):
    """Pure-JAX transcription of the PyTorch forward (for validation)."""
    batch, seq, _ = x.shape
    M = A.shape[0]
    c = jnp.zeros((batch, M), jnp.float32)
    h = jnp.zeros((batch, C.shape[0]), jnp.float32)
    for t in range(seq):
        u = jnp.tanh(x[:, t] @ W.T + b)
        c = A @ c + B @ u
        h = jnp.tanh(C @ c + D @ u)
    return h


if __name__ == "__main__":
    # Small shapes consistent with the module's (degenerate) shape constraints.
    N = 32          # batch == input_size == hidden_size == memory_size
    SEQ = 8

    key = jax.random.PRNGKey(0)
    kx, kA, kB, kC, kD, kW, kb = jax.random.split(key, 7)

    x = jax.random.normal(kx, (N, SEQ, N), dtype=jnp.float32)
    A = jax.random.normal(kA, (N, N), dtype=jnp.float32) * 0.1
    B = jax.random.normal(kB, (N, N), dtype=jnp.float32) * 0.1
    C = jax.random.normal(kC, (N, N), dtype=jnp.float32) * 0.1
    D = jax.random.normal(kD, (N, N), dtype=jnp.float32) * 0.1
    # torch.nn.Linear default init: U(-1/sqrt(in), 1/sqrt(in))
    bound = 1.0 / np.sqrt(N)
    W = jax.random.uniform(kW, (N, N), jnp.float32, -bound, bound)
    b = jax.random.uniform(kb, (N,), jnp.float32, -bound, bound)

    h_pallas = jax.block_until_ready(lmu_cell_forward(x, A, B, C, D, W, b))
    h_ref = jax.block_until_ready(lmu_cell_reference(x, A, B, C, D, W, b))

    # Tolerance covers the FP reassociation from collapsing the recurrence.
    np.testing.assert_allclose(np.asarray(h_pallas), np.asarray(h_ref),
                               rtol=1e-3, atol=1e-3)
    print("KERNEL_OK")
</pallas_src>

<mosaic_0001>
module attributes {stable_mosaic.version = 11 : i64} {
  func.func @lmu_kernel(%arg0: memref<32x256xf32, #tpu.memory_space<vmem>>, %arg1: memref<32x32xf32, #tpu.memory_space<vmem>>, %arg2: memref<32x1xf32, #tpu.memory_space<vmem>>, %arg3: memref<32x256xf32, #tpu.memory_space<vmem>>, %arg4: memref<32x32xf32, #tpu.memory_space<vmem>>) attributes {dimension_semantics = [], scalar_prefetch = 0 : i64, scratch_operands = 0 : i64, tpu.core_type = #tpu.core_type<tc>} {
    %c0 = arith.constant 0 : index
    %c0_0 = arith.constant 0 : index
    %0 = vector.load %arg1[%c0, %c0_0] : memref<32x32xf32, #tpu.memory_space<vmem>>, vector<32x32xf32>
    %c0_1 = arith.constant 0 : index
    %c0_2 = arith.constant 0 : index
    %1 = vector.load %arg0[%c0_1, %c0_2] : memref<32x256xf32, #tpu.memory_space<vmem>>, vector<32x256xf32>
    %cst = arith.constant dense<0.000000e+00> : vector<32x256xf32>
    %2 = tpu.matmul %0, %1, %cst {dimension_numbers = #tpu.dot_dimension_numbers<[1], [0], [0], [1], [0, 0, 1, 1], [], []>, precision = #tpu.contract_precision<fp32>} : vector<32x32xf32>, vector<32x256xf32>, vector<32x256xf32> -> vector<32x256xf32>
    %c0_3 = arith.constant 0 : index
    %c0_4 = arith.constant 0 : index
    %3 = vector.load %arg2[%c0_3, %c0_4] : memref<32x1xf32, #tpu.memory_space<vmem>>, vector<32x1xf32>
    %4 = vector.broadcast %3 : vector<32x1xf32> to vector<32x256xf32>
    %5 = arith.addf %2, %4 : vector<32x256xf32>
    %6 = math.tanh %5 : vector<32x256xf32>
    %c0_5 = arith.constant 0 : index
    %c0_6 = arith.constant 0 : index
    %7 = vector.load %arg3[%c0_5, %c0_6] : memref<32x256xf32, #tpu.memory_space<vmem>>, vector<32x256xf32>
    %cst_7 = arith.constant dense<0.000000e+00> : vector<32x32xf32>
    %8 = tpu.matmul %7, %6, %cst_7 {dimension_numbers = #tpu.dot_dimension_numbers<[1], [1], [0], [0], [0, 0, 1, 0], [], []>, precision = #tpu.contract_precision<fp32>} : vector<32x256xf32>, vector<32x256xf32>, vector<32x32xf32> -> vector<32x32xf32>
    %9 = math.tanh %8 : vector<32x32xf32>
    %c0_8 = arith.constant 0 : index
    %c0_9 = arith.constant 0 : index
    %10 = vector.load %arg4[%c0_8, %c0_9] : memref<32x32xf32, #tpu.memory_space<vmem>>, vector<32x32xf32>
    tpu.vector_store %arg4[%c0_8, %c0_9], %9 {strides = array<i32>} : memref<32x32xf32, #tpu.memory_space<vmem>>, vector<32x32xf32>,
    return
  }
}

</mosaic_0001>

<llo_original>
// kernel: lmu_cell_forward.1
$region0: #{lmu_cell_forward.1}
  #allocation0 [shape = 'u32[]', space=smem, size = 0x4, offset = 0x4, fixed_abs, tag = 'smem constant byte address 0x4 - core index']
  #allocation1 [shape = 'u32[72,128]{1,0:T(1,128)}', space=vmem, size = 0x9000, scoped, tag = 'internal scratch']
  %s0 = inlined_call_operand.vmem [shape: f32[32,256], index: 0, kind: input, shape index: {}]
  %s1 = inlined_call_operand.vmem [shape: f32[32,32], index: 1, kind: input, shape index: {}]
  %s2 = inlined_call_operand.vmem [shape: f32[32,1], index: 2, kind: input, shape index: {}]
  %s3 = inlined_call_operand.vmem [shape: f32[32,256], index: 3, kind: input, shape index: {}]
  %s4 = inlined_call_operand.hbm [shape: f32[32,32], index: 4, kind: output, shape index: {}]
  %s5 = sld [smem:[#allocation0]]
  $region26: #{lmu_cell_forward.1} parent=0
    _
  %s7 = ssub.s32 1, %s5
  %s8 = scalar_select 0, %s7, %s5
  $region1: #{lmu_cell_forward.1} parent=0
    #allocation2 [shape = 'u8[16384]{0}', space=vmem, size = 0x4000, scoped, tag = 'output window, operand 0, single buffered']
    #allocation3 [shape = 's32[1]{0}', space=sflag, size = 0x4, scoped, tag = 'scoped memory for lmu_cell_forward.1']
    %9 = vsyncpa [#allocation3], 0
    // Predicated region
    $region2: #{lmu_cell_forward.1} parent=1 // pred_check
      _
    $region3: #{lmu_cell_forward.1} parent=1 // pred_check_branch
      %11 = sbr.rel (0) target = $region5
    $region4: #{lmu_cell_forward.1} parent=1 // pred_region
      _
    $region5: #{lmu_cell_forward.1} parent=1 // pred_fallthru
      _
    // Predicated region
    $region6: #{lmu_cell_forward.1} parent=1 // pred_check
      _
    $region7: #{lmu_cell_forward.1} parent=1 // pred_check_branch
      %13 = sbr.rel (0) target = $region9
    $region8: #{lmu_cell_forward.1} parent=1 // pred_region
      _
    $region9: #{lmu_cell_forward.1} parent=1 // pred_fallthru
      _
    // Predicated region
    $region10: #{lmu_cell_forward.1} parent=1 // pred_check
      _
    $region11: #{lmu_cell_forward.1} parent=1 // pred_check_branch
      %15 = sbr.rel (0) target = $region13
    $region12: #{lmu_cell_forward.1} parent=1 // pred_region
      _
    $region13: #{lmu_cell_forward.1} parent=1 // pred_fallthru
      _
    // Predicated region
    $region14: #{lmu_cell_forward.1} parent=1 // pred_check
      _
    $region15: #{lmu_cell_forward.1} parent=1 // pred_check_branch
      %17 = sbr.rel (0) target = $region17
    $region16: #{lmu_cell_forward.1} parent=1 // pred_region
      _
    $region17: #{lmu_cell_forward.1} parent=1 // pred_fallthru
      _
    %v18 = vld [vmem:[%s1] sm:$0xff]
    %v19 = vld [vmem:[%s1 + $0x8] sm:$0xff]
    %v20 = vld [vmem:[%s1 + $0x10] sm:$0xff]
    %v21 = vld [vmem:[%s1 + $0x18] sm:$0xff]
    %v22 = vld [vmem:[%s0] sm:$0xff]
    %v23 = vld [vmem:[%s0 + $0x8] sm:$0xff]
    %v24 = vld [vmem:[%s0 + $0x10] sm:$0xff]
    %v25 = vld [vmem:[%s0 + $0x18] sm:$0xff]
    %v26 = vld [vmem:[%s0 + $0x20] sm:$0xff]
    %v27 = vld [vmem:[%s0 + $0x28] sm:$0xff]
    %v28 = vld [vmem:[%s0 + $0x30] sm:$0xff]
    %v29 = vld [vmem:[%s0 + $0x38] sm:$0xff]
    %v30 = vld [vmem:[%s2] sm:$0xff]
    %v31 = vld [vmem:[%s2 + $0x8] sm:$0xff]
    %v32 = vld [vmem:[%s2 + $0x10] sm:$0xff]
    %v33 = vld [vmem:[%s2 + $0x18] sm:$0xff]
    %35 = vset.pattern.permute.xlu0 0
    %36 = vperm.xlu0 %35, %v30
    %v37 = vpop.permute.xlu0 %36
    %40 = vset.pattern.permute.xlu0 0
    %41 = vperm.xlu0 %40, %v31
    %v42 = vpop.permute.xlu0 %41
    %45 = vset.pattern.permute.xlu0 0
    %46 = vperm.xlu0 %45, %v32
    %v47 = vpop.permute.xlu0 %46
    %50 = vset.pattern.permute.xlu0 0
    %51 = vperm.xlu0 %50, %v33
    %v52 = vpop.permute.xlu0 %51
    %vm54 = vcmask 261120
    %v56 = vsel %vm54, %v18, 0
    %v59 = vsel %vm54, %v19, 0
    %v62 = vsel %vm54, %v20, 0
    %v65 = vsel %vm54, %v21, 0
    %67 = vmatpush.msra.mxu0 0.0
    %68 = vmatpush.msra.mxu0 0.0
    %69 = vmatpush.msra.mxu0 0.0
    %70 = vmatpush.msra.mxu0 0.0
    %71 = vmatpush.msra.mxu0 0.0
    %72 = vmatpush.msra.mxu0 0.0
    %73 = vmatpush.msra.mxu0 0.0
    %74 = vmatpush.msra.mxu0 0.0
    %75 = vmatpush.msra.mxu0 0.0
    %76 = vmatpush.msra.mxu0 0.0
    %77 = vmatpush.msra.mxu0 0.0
    %78 = vmatpush.msra.mxu0 0.0
    %v79 = vand.u32 %v28, 4294901760
    %80 = vmatpush.msra.mxu0 %v79
    %v81 = vand.u32 %v26, 4294901760
    %82 = vmatpush.msra.mxu0 %v81
    %v83 = vand.u32 %v24, 4294901760
    %84 = vmatpush.msra.mxu0 %v83
    %v85 = vand.u32 %v22, 4294901760
    %86 = vmatpush.msra.mxu0 %v85
    %v87 = vand.u32 %v56, 4294901760
    %v88 = vsub.f32 %v56, %v87
    %v89 = vand.u32 %v88, 4294901760
    %v90 = vsub.f32 %v88, %v89
    %v91 = vand.u32 %v90, 4294901760
    %92 = vmatmul.f32.gmra.mxu0 %v91
    %v93 = vpop.f32.mrf.mxu0
    %v94 = vadd.f32 %v37, %v93
    %v95 = vand.u32 %v59, 4294901760
    %v96 = vsub.f32 %v59, %v95
    %v97 = vand.u32 %v96, 4294901760
    %v98 = vsub.f32 %v96, %v97
    %v99 = vand.u32 %v98, 4294901760
    %100 = vmatmul.f32.gmra.mxu0 %v99
    %v101 = vpop.f32.mrf.mxu0
    %v102 = vadd.f32 %v42, %v101
    %v103 = vand.u32 %v62, 4294901760
    %v104 = vsub.f32 %v62, %v103
    %v105 = vand.u32 %v104, 4294901760
    %v106 = vsub.f32 %v104, %v105
    %v107 = vand.u32 %v106, 4294901760
    %108 = vmatmul.f32.gmra.mxu0 %v107
    %v109 = vpop.f32.mrf.mxu0
    %v110 = vadd.f32 %v47, %v109
    %v111 = vand.u32 %v65, 4294901760
    %v112 = vsub.f32 %v65, %v111
    %v113 = vand.u32 %v112, 4294901760
    %v114 = vsub.f32 %v112, %v113
    %v115 = vand.u32 %v114, 4294901760
    %116 = vmatmul.f32.gmra.mxu0 %v115
    %v117 = vpop.f32.mrf.mxu0
    %v118 = vadd.f32 %v52, %v117
    %119 = vdwg.mxu0
    %120 = vmatpush.msra.mxu0 0.0
    %121 = vmatpush.msra.mxu0 0.0
    %122 = vmatpush.msra.mxu0 0.0
    %123 = vmatpush.msra.mxu0 0.0
    %124 = vmatpush.msra.mxu0 0.0
    %125 = vmatpush.msra.mxu0 0.0
    %126 = vmatpush.msra.mxu0 0.0
    %127 = vmatpush.msra.mxu0 0.0
    %128 = vmatpush.msra.mxu0 0.0
    %129 = vmatpush.msra.mxu0 0.0
    %130 = vmatpush.msra.mxu0 0.0
    %131 = vmatpush.msra.mxu0 0.0
    %v132 = vand.u32 %v28, 4294901760
    %v133 = vsub.f32 %v28, %v132
    %v134 = vand.u32 %v133, 4294901760
    %v135 = vsub.f32 %v133, %v134
    %v136 = vand.u32 %v135, 4294901760
    %137 = vmatpush.msra.mxu0 %v136
    %v138 = vand.u32 %v26, 4294901760
    %v139 = vsub.f32 %v26, %v138
    %v140 = vand.u32 %v139, 4294901760
    %v141 = vsub.f32 %v139, %v140
    %v142 = vand.u32 %v141, 4294901760
    %143 = vmatpush.msra.mxu0 %v142
    %v144 = vand.u32 %v24, 4294901760
    %v145 = vsub.f32 %v24, %v144
    %v146 = vand.u32 %v145, 4294901760
    %v147 = vsub.f32 %v145, %v146
    %v148 = vand.u32 %v147, 4294901760
    %149 = vmatpush.msra.mxu0 %v148
    %v150 = vand.u32 %v22, 4294901760
    %v151 = vsub.f32 %v22, %v150
    %v152 = vand.u32 %v151, 4294901760
    %v153 = vsub.f32 %v151, %v152
    %v154 = vand.u32 %v153, 4294901760
    %155 = vmatpush.msra.mxu0 %v154
    %v156 = vand.u32 %v56, 4294901760
    %157 = vmatmul.f32.gmra.mxu0 %v156
    %v158 = vpop.f32.mrf.mxu0
    %v159 = vadd.f32 %v94, %v158
    %v160 = vand.u32 %v59, 4294901760
    %161 = vmatmul.f32.gmra.mxu0 %v160
    %v162 = vpop.f32.mrf.mxu0
    %v163 = vadd.f32 %v102, %v162
    %v164 = vand.u32 %v62, 4294901760
    %165 = vmatmul.f32.gmra.mxu0 %v164
    %v166 = vpop.f32.mrf.mxu0
    %v167 = vadd.f32 %v110, %v166
    %v168 = vand.u32 %v65, 4294901760
    %169 = vmatmul.f32.gmra.mxu0 %v168
    %v170 = vpop.f32.mrf.mxu0
    %v171 = vadd.f32 %v118, %v170
    %172 = vdwg.mxu0
    %173 = vmatpush.msra.mxu0 0.0
    %174 = vmatpush.msra.mxu0 0.0
    %175 = vmatpush.msra.mxu0 0.0
    %176 = vmatpush.msra.mxu0 0.0
    %177 = vmatpush.msra.mxu0 0.0
    %178 = vmatpush.msra.mxu0 0.0
    %179 = vmatpush.msra.mxu0 0.0
    %180 = vmatpush.msra.mxu0 0.0
    %181 = vmatpush.msra.mxu0 0.0
    %182 = vmatpush.msra.mxu0 0.0
    %183 = vmatpush.msra.mxu0 0.0
    %184 = vmatpush.msra.mxu0 0.0
    %v185 = vand.u32 %v28, 4294901760
    %v186 = vsub.f32 %v28, %v185
    %187 = vmatpush.msra.mxu0 %v186
    %v188 = vand.u32 %v26, 4294901760
    %v189 = vsub.f32 %v26, %v188
    %190 = vmatpush.msra.mxu0 %v189
    %v191 = vand.u32 %v24, 4294901760
    %v192 = vsub.f32 %v24, %v191
    %193 = vmatpush.msra.mxu0 %v192
    %v194 = vand.u32 %v22, 4294901760
    %v195 = vsub.f32 %v22, %v194
    %196 = vmatpush.msra.mxu0 %v195
    %v197 = vand.u32 %v56, 4294901760
    %v198 = vsub.f32 %v56, %v197
    %199 = vmatmul.f32.gmra.mxu0 %v198
    %v200 = vpop.f32.mrf.mxu0
    %v201 = vadd.f32 %v159, %v200
    %v202 = vand.u32 %v59, 4294901760
    %v203 = vsub.f32 %v59, %v202
    %204 = vmatmul.f32.gmra.mxu0 %v203
    %v205 = vpop.f32.mrf.mxu0
    %v206 = vadd.f32 %v163, %v205
    %v207 = vand.u32 %v62, 4294901760
    %v208 = vsub.f32 %v62, %v207
    %209 = vmatmul.f32.gmra.mxu0 %v208
    %v210 = vpop.f32.mrf.mxu0
    %v211 = vadd.f32 %v167, %v210
    %v212 = vand.u32 %v65, 4294901760
    %v213 = vsub.f32 %v65, %v212
    %214 = vmatmul.f32.gmra.mxu0 %v213
    %v215 = vpop.f32.mrf.mxu0
    %v216 = vadd.f32 %v171, %v215
    %217 = vdwg.mxu0
    %218 = vmatpush.msra.mxu0 0.0
    %219 = vmatpush.msra.mxu0 0.0
    %220 = vmatpush.msra.mxu0 0.0
    %221 = vmatpush.msra.mxu0 0.0
    %222 = vmatpush.msra.mxu0 0.0
    %223 = vmatpush.msra.mxu0 0.0
    %224 = vmatpush.msra.mxu0 0.0
    %225 = vmatpush.msra.mxu0 0.0
    %226 = vmatpush.msra.mxu0 0.0
    %227 = vmatpush.msra.mxu0 0.0
    %228 = vmatpush.msra.mxu0 0.0
    %229 = vmatpush.msra.mxu0 0.0
    %v230 = vand.u32 %v28, 4294901760
    %231 = vmatpush.msra.mxu0 %v230
    %v232 = vand.u32 %v26, 4294901760
    %233 = vmatpush.msra.mxu0 %v232
    %v234 = vand.u32 %v24, 4294901760
    %235 = vmatpush.msra.mxu0 %v234
    %v236 = vand.u32 %v22, 4294901760
    %237 = vmatpush.msra.mxu0 %v236
    %v238 = vand.u32 %v56, 4294901760
    %v239 = vsub.f32 %v56, %v238
    %v240 = vand.u32 %v239, 4294901760
    %241 = vmatmul.f32.gmra.mxu0 %v240
    %v242 = vpop.f32.mrf.mxu0
    %v243 = vadd.f32 %v201, %v242
    %v244 = vand.u32 %v59, 4294901760
    %v245 = vsub.f32 %v59, %v244
    %v246 = vand.u32 %v245, 4294901760
    %247 = vmatmul.f32.gmra.mxu0 %v246
    %v248 = vpop.f32.mrf.mxu0
    %v249 = vadd.f32 %v206, %v248
    %v250 = vand.u32 %v62, 4294901760
    %v251 = vsub.f32 %v62, %v250
    %v252 = vand.u32 %v251, 4294901760
    %253 = vmatmul.f32.gmra.mxu0 %v252
    %v254 = vpop.f32.mrf.mxu0
    %v255 = vadd.f32 %v211, %v254
    %v256 = vand.u32 %v65, 4294901760
    %v257 = vsub.f32 %v65, %v256
    %v258 = vand.u32 %v257, 4294901760
    %259 = vmatmul.f32.gmra.mxu0 %v258
    %v260 = vpop.f32.mrf.mxu0
    %v261 = vadd.f32 %v216, %v260
    %262 = vdwg.mxu0
    %263 = vmatpush.msra.mxu0 0.0
    %264 = vmatpush.msra.mxu0 0.0
    %265 = vmatpush.msra.mxu0 0.0
    %266 = vmatpush.msra.mxu0 0.0
    %267 = vmatpush.msra.mxu0 0.0
    %268 = vmatpush.msra.mxu0 0.0
    %269 = vmatpush.msra.mxu0 0.0
    %270 = vmatpush.msra.mxu0 0.0
    %271 = vmatpush.msra.mxu0 0.0
    %272 = vmatpush.msra.mxu0 0.0
    %273 = vmatpush.msra.mxu0 0.0
    %274 = vmatpush.msra.mxu0 0.0
    %v275 = vand.u32 %v28, 4294901760
    %v276 = vsub.f32 %v28, %v275
    %v277 = vand.u32 %v276, 4294901760
    %278 = vmatpush.msra.mxu0 %v277
    %v279 = vand.u32 %v26, 4294901760
    %v280 = vsub.f32 %v26, %v279
    %v281 = vand.u32 %v280, 4294901760
    %282 = vmatpush.msra.mxu0 %v281
    %v283 = vand.u32 %v24, 4294901760
    %v284 = vsub.f32 %v24, %v283
    %v285 = vand.u32 %v284, 4294901760
    %286 = vmatpush.msra.mxu0 %v285
    %v287 = vand.u32 %v22, 4294901760
    %v288 = vsub.f32 %v22, %v287
    %v289 = vand.u32 %v288, 4294901760
    %290 = vmatpush.msra.mxu0 %v289
    %v291 = vand.u32 %v56, 4294901760
    %292 = vmatmul.f32.gmra.mxu0 %v291
    %v293 = vpop.f32.mrf.mxu0
    %v294 = vadd.f32 %v243, %v293
    %v295 = vand.u32 %v59, 4294901760
    %296 = vmatmul.f32.gmra.mxu0 %v295
    %v297 = vpop.f32.mrf.mxu0
    %v298 = vadd.f32 %v249, %v297
    %v299 = vand.u32 %v62, 4294901760
    %300 = vmatmul.f32.gmra.mxu0 %v299
    %v301 = vpop.f32.mrf.mxu0
    %v302 = vadd.f32 %v255, %v301
    %v303 = vand.u32 %v65, 4294901760
    %304 = vmatmul.f32.gmra.mxu0 %v303
    %v305 = vpop.f32.mrf.mxu0
    %v306 = vadd.f32 %v261, %v305
    %307 = vdwg.mxu0
    %308 = vmatpush.msra.mxu0 0.0
    %309 = vmatpush.msra.mxu0 0.0
    %310 = vmatpush.msra.mxu0 0.0
    %311 = vmatpush.msra.mxu0 0.0
    %312 = vmatpush.msra.mxu0 0.0
    %313 = vmatpush.msra.mxu0 0.0
    %314 = vmatpush.msra.mxu0 0.0
    %315 = vmatpush.msra.mxu0 0.0
    %316 = vmatpush.msra.mxu0 0.0
    %317 = vmatpush.msra.mxu0 0.0
    %318 = vmatpush.msra.mxu0 0.0
    %319 = vmatpush.msra.mxu0 0.0
    %v320 = vand.u32 %v28, 4294901760
    %321 = vmatpush.msra.mxu0 %v320
    %v322 = vand.u32 %v26, 4294901760
    %323 = vmatpush.msra.mxu0 %v322
    %v324 = vand.u32 %v24, 4294901760
    %325 = vmatpush.msra.mxu0 %v324
    %v326 = vand.u32 %v22, 4294901760
    %327 = vmatpush.msra.mxu0 %v326
    %v328 = vand.u32 %v56, 4294901760
    %329 = vmatmul.f32.gmra.mxu0 %v328
    %v330 = vpop.f32.mrf.mxu0
    %v331 = vadd.f32 %v294, %v330
    %v332 = vand.u32 %v59, 4294901760
    %333 = vmatmul.f32.gmra.mxu0 %v332
    %v334 = vpop.f32.mrf.mxu0
    %v335 = vadd.f32 %v298, %v334
    %v336 = vand.u32 %v62, 4294901760
    %337 = vmatmul.f32.gmra.mxu0 %v336
    %v338 = vpop.f32.mrf.mxu0
    %v339 = vadd.f32 %v302, %v338
    %v340 = vand.u32 %v65, 4294901760
    %341 = vmatmul.f32.gmra.mxu0 %v340
    %v342 = vpop.f32.mrf.mxu0
    %v343 = vadd.f32 %v306, %v342
    %344 = vdwg.mxu0
    %345 = vmatpush.msra.mxu0 0.0
    %346 = vmatpush.msra.mxu0 0.0
    %347 = vmatpush.msra.mxu0 0.0
    %348 = vmatpush.msra.mxu0 0.0
    %349 = vmatpush.msra.mxu0 0.0
    %350 = vmatpush.msra.mxu0 0.0
    %351 = vmatpush.msra.mxu0 0.0
    %352 = vmatpush.msra.mxu0 0.0
    %353 = vmatpush.msra.mxu0 0.0
    %354 = vmatpush.msra.mxu0 0.0
    %355 = vmatpush.msra.mxu0 0.0
    %356 = vmatpush.msra.mxu0 0.0
    %v357 = vand.u32 %v29, 4294901760
    %358 = vmatpush.msra.mxu0 %v357
    %v359 = vand.u32 %v27, 4294901760
    %360 = vmatpush.msra.mxu0 %v359
    %v361 = vand.u32 %v25, 4294901760
    %362 = vmatpush.msra.mxu0 %v361
    %v363 = vand.u32 %v23, 4294901760
    %364 = vmatpush.msra.mxu0 %v363
    %v365 = vand.u32 %v56, 4294901760
    %v366 = vsub.f32 %v56, %v365
    %v367 = vand.u32 %v366, 4294901760
    %v368 = vsub.f32 %v366, %v367
    %v369 = vand.u32 %v368, 4294901760
    %370 = vmatmul.f32.gmra.mxu0 %v369
    %v371 = vpop.f32.mrf.mxu0
    %v372 = vadd.f32 %v37, %v371
    %v373 = vand.u32 %v59, 4294901760
    %v374 = vsub.f32 %v59, %v373
    %v375 = vand.u32 %v374, 4294901760
    %v376 = vsub.f32 %v374, %v375
    %v377 = vand.u32 %v376, 4294901760
    %378 = vmatmul.f32.gmra.mxu0 %v377
    %v379 = vpop.f32.mrf.mxu0
    %v380 = vadd.f32 %v42, %v379
    %v381 = vand.u32 %v62, 4294901760
    %v382 = vsub.f32 %v62, %v381
    %v383 = vand.u32 %v382, 4294901760
    %v384 = vsub.f32 %v382, %v383
    %v385 = vand.u32 %v384, 4294901760
    %386 = vmatmul.f32.gmra.mxu0 %v385
    %v387 = vpop.f32.mrf.mxu0
    %v388 = vadd.f32 %v47, %v387
    %v389 = vand.u32 %v65, 4294901760
    %v390 = vsub.f32 %v65, %v389
    %v391 = vand.u32 %v390, 4294901760
    %v392 = vsub.f32 %v390, %v391
    %v393 = vand.u32 %v392, 4294901760
    %394 = vmatmul.f32.gmra.mxu0 %v393
    %v395 = vpop.f32.mrf.mxu0
    %v396 = vadd.f32 %v52, %v395
    %397 = vdwg.mxu0
    %398 = vmatpush.msra.mxu0 0.0
    %399 = vmatpush.msra.mxu0 0.0
    %400 = vmatpush.msra.mxu0 0.0
    %401 = vmatpush.msra.mxu0 0.0
    %402 = vmatpush.msra.mxu0 0.0
    %403 = vmatpush.msra.mxu0 0.0
    %404 = vmatpush.msra.mxu0 0.0
    %405 = vmatpush.msra.mxu0 0.0
    %406 = vmatpush.msra.mxu0 0.0
    %407 = vmatpush.msra.mxu0 0.0
    %408 = vmatpush.msra.mxu0 0.0
    %409 = vmatpush.msra.mxu0 0.0
    %v410 = vand.u32 %v29, 4294901760
    %v411 = vsub.f32 %v29, %v410
    %v412 = vand.u32 %v411, 4294901760
    %v413 = vsub.f32 %v411, %v412
    %v414 = vand.u32 %v413, 4294901760
    %415 = vmatpush.msra.mxu0 %v414
    %v416 = vand.u32 %v27, 4294901760
    %v417 = vsub.f32 %v27, %v416
    %v418 = vand.u32 %v417, 4294901760
    %v419 = vsub.f32 %v417, %v418
    %v420 = vand.u32 %v419, 4294901760
    %421 = vmatpush.msra.mxu0 %v420
    %v422 = vand.u32 %v25, 4294901760
    %v423 = vsub.f32 %v25, %v422
    %v424 = vand.u32 %v423, 4294901760
    %v425 = vsub.f32 %v423, %v424
    %v426 = vand.u32 %v425, 4294901760
    %427 = vmatpush.msra.mxu0 %v426
    %v428 = vand.u32 %v23, 4294901760
    %v429 = vsub.f32 %v23, %v428
    %v430 = vand.u32 %v429, 4294901760
    %v431 = vsub.f32 %v429, %v430
    %v432 = vand.u32 %v431, 4294901760
    %433 = vmatpush.msra.mxu0 %v432
    %v434 = vand.u32 %v56, 4294901760
    %435 = vmatmul.f32.gmra.mxu0 %v434
    %v436 = vpop.f32.mrf.mxu0
    %v437 = vadd.f32 %v372, %v436
    %v438 = vand.u32 %v59, 4294901760
    %439 = vmatmul.f32.gmra.mxu0 %v438
    %v440 = vpop.f32.mrf.mxu0
    %v441 = vadd.f32 %v380, %v440
    %v442 = vand.u32 %v62, 4294901760
    %443 = vmatmul.f32.gmra.mxu0 %v442
    %v444 = vpop.f32.mrf.mxu0
    %v445 = vadd.f32 %v388, %v444
    %v446 = vand.u32 %v65, 4294901760
    %447 = vmatmul.f32.gmra.mxu0 %v446
    %v448 = vpop.f32.mrf.mxu0
    %v449 = vadd.f32 %v396, %v448
    %450 = vdwg.mxu0
    %451 = vmatpush.msra.mxu0 0.0
    %452 = vmatpush.msra.mxu0 0.0
    %453 = vmatpush.msra.mxu0 0.0
    %454 = vmatpush.msra.mxu0 0.0
    %455 = vmatpush.msra.mxu0 0.0
    %456 = vmatpush.msra.mxu0 0.0
    %457 = vmatpush.msra.mxu0 0.0
    %458 = vmatpush.msra.mxu0 0.0
    %459 = vmatpush.msra.mxu0 0.0
    %460 = vmatpush.msra.mxu0 0.0
    %461 = vmatpush.msra.mxu0 0.0
    %462 = vmatpush.msra.mxu0 0.0
    %v463 = vand.u32 %v29, 4294901760
    %v464 = vsub.f32 %v29, %v463
    %465 = vmatpush.msra.mxu0 %v464
    %v466 = vand.u32 %v27, 4294901760
    %v467 = vsub.f32 %v27, %v466
    %468 = vmatpush.msra.mxu0 %v467
    %v469 = vand.u32 %v25, 4294901760
    %v470 = vsub.f32 %v25, %v469
    %471 = vmatpush.msra.mxu0 %v470
    %v472 = vand.u32 %v23, 4294901760
    %v473 = vsub.f32 %v23, %v472
    %474 = vmatpush.msra.mxu0 %v473
    %v475 = vand.u32 %v56, 4294901760
    %v476 = vsub.f32 %v56, %v475
    %477 = vmatmul.f32.gmra.mxu0 %v476
    %v478 = vpop.f32.mrf.mxu0
    %v479 = vadd.f32 %v437, %v478
    %v480 = vand.u32 %v59, 4294901760
    %v481 = vsub.f32 %v59, %v480
    %482 = vmatmul.f32.gmra.mxu0 %v481
    %v483 = vpop.f32.mrf.mxu0
    %v484 = vadd.f32 %v441, %v483
    %v485 = vand.u32 %v62, 4294901760
    %v486 = vsub.f32 %v62, %v485
    %487 = vmatmul.f32.gmra.mxu0 %v486
    %v488 = vpop.f32.mrf.mxu0
    %v489 = vadd.f32 %v445, %v488
    %v490 = vand.u32 %v65, 4294901760
    %v491 = vsub.f32 %v65, %v490
    %492 = vmatmul.f32.gmra.mxu0 %v491
    %v493 = vpop.f32.mrf.mxu0
    %v494 = vadd.f32 %v449, %v493
    %495 = vdwg.mxu0
    %496 = vmatpush.msra.mxu0 0.0
    %497 = vmatpush.msra.mxu0 0.0
    %498 = vmatpush.msra.mxu0 0.0
    %499 = vmatpush.msra.mxu0 0.0
    %500 = vmatpush.msra.mxu0 0.0
    %501 = vmatpush.msra.mxu0 0.0
    %502 = vmatpush.msra.mxu0 0.0
    %503 = vmatpush.msra.mxu0 0.0
    %504 = vmatpush.msra.mxu0 0.0
    %505 = vmatpush.msra.mxu0 0.0
    %506 = vmatpush.msra.mxu0 0.0
    %507 = vmatpush.msra.mxu0 0.0
    %v508 = vand.u32 %v29, 4294901760
    %509 = vmatpush.msra.mxu0 %v508
    %v510 = vand.u32 %v27, 4294901760
    %511 = vmatpush.msra.mxu0 %v510
    %v512 = vand.u32 %v25, 4294901760
    %513 = vmatpush.msra.mxu0 %v512
    %v514 = vand.u32 %v23, 4294901760
    %515 = vmatpush.msra.mxu0 %v514
    %v516 = vand.u32 %v56, 4294901760
    %v517 = vsub.f32 %v56, %v516
    %v518 = vand.u32 %v517, 4294901760
    %519 = vmatmul.f32.gmra.mxu0 %v518
    %v520 = vpop.f32.mrf.mxu0
    %v521 = vadd.f32 %v479, %v520
    %v522 = vand.u32 %v59, 4294901760
    %v523 = vsub.f32 %v59, %v522
    %v524 = vand.u32 %v523, 4294901760
    %525 = vmatmul.f32.gmra.mxu0 %v524
    %v526 = vpop.f32.mrf.mxu0
    %v527 = vadd.f32 %v484, %v526
    %v528 = vand.u32 %v62, 4294901760
    %v529 = vsub.f32 %v62, %v528
    %v530 = vand.u32 %v529, 4294901760
    %531 = vmatmul.f32.gmra.mxu0 %v530
    %v532 = vpop.f32.mrf.mxu0
    %v533 = vadd.f32 %v489, %v532
    %v534 = vand.u32 %v65, 4294901760
    %v535 = vsub.f32 %v65, %v534
    %v536 = vand.u32 %v535, 4294901760
    %537 = vmatmul.f32.gmra.mxu0 %v536
    %v538 = vpop.f32.mrf.mxu0
    %v539 = vadd.f32 %v494, %v538
    %540 = vdwg.mxu0
    %541 = vmatpush.msra.mxu0 0.0
    %542 = vmatpush.msra.mxu0 0.0
    %543 = vmatpush.msra.mxu0 0.0
    %544 = vmatpush.msra.mxu0 0.0
    %545 = vmatpush.msra.mxu0 0.0
    %546 = vmatpush.msra.mxu0 0.0
    %547 = vmatpush.msra.mxu0 0.0
    %548 = vmatpush.msra.mxu0 0.0
    %549 = vmatpush.msra.mxu0 0.0
    %550 = vmatpush.msra.mxu0 0.0
    %551 = vmatpush.msra.mxu0 0.0
    %552 = vmatpush.msra.mxu0 0.0
    %v553 = vand.u32 %v29, 4294901760
    %v554 = vsub.f32 %v29, %v553
    %v555 = vand.u32 %v554, 4294901760
    %556 = vmatpush.msra.mxu0 %v555
    %v557 = vand.u32 %v27, 4294901760
    %v558 = vsub.f32 %v27, %v557
    %v559 = vand.u32 %v558, 4294901760
    %560 = vmatpush.msra.mxu0 %v559
    %v561 = vand.u32 %v25, 4294901760
    %v562 = vsub.f32 %v25, %v561
    %v563 = vand.u32 %v562, 4294901760
    %564 = vmatpush.msra.mxu0 %v563
    %v565 = vand.u32 %v23, 4294901760
    %v566 = vsub.f32 %v23, %v565
    %v567 = vand.u32 %v566, 4294901760
    %568 = vmatpush.msra.mxu0 %v567
    %v569 = vand.u32 %v56, 4294901760
    %570 = vmatmul.f32.gmra.mxu0 %v569
    %v571 = vpop.f32.mrf.mxu0
    %v572 = vadd.f32 %v521, %v571
    %v573 = vand.u32 %v59, 4294901760
    %574 = vmatmul.f32.gmra.mxu0 %v573
    %v575 = vpop.f32.mrf.mxu0
    %v576 = vadd.f32 %v527, %v575
    %v577 = vand.u32 %v62, 4294901760
    %578 = vmatmul.f32.gmra.mxu0 %v577
    %v579 = vpop.f32.mrf.mxu0
    %v580 = vadd.f32 %v533, %v579
    %v581 = vand.u32 %v65, 4294901760
    %582 = vmatmul.f32.gmra.mxu0 %v581
    %v583 = vpop.f32.mrf.mxu0
    %v584 = vadd.f32 %v539, %v583
    %585 = vdwg.mxu0
    %586 = vmatpush.msra.mxu0 0.0
    %587 = vmatpush.msra.mxu0 0.0
    %588 = vmatpush.msra.mxu0 0.0
    %589 = vmatpush.msra.mxu0 0.0
    %590 = vmatpush.msra.mxu0 0.0
    %591 = vmatpush.msra.mxu0 0.0
    %592 = vmatpush.msra.mxu0 0.0
    %593 = vmatpush.msra.mxu0 0.0
    %594 = vmatpush.msra.mxu0 0.0
    %595 = vmatpush.msra.mxu0 0.0
    %596 = vmatpush.msra.mxu0 0.0
    %597 = vmatpush.msra.mxu0 0.0
    %v598 = vand.u32 %v29, 4294901760
    %599 = vmatpush.msra.mxu0 %v598
    %v600 = vand.u32 %v27, 4294901760
    %601 = vmatpush.msra.mxu0 %v600
    %v602 = vand.u32 %v25, 4294901760
    %603 = vmatpush.msra.mxu0 %v602
    %v604 = vand.u32 %v23, 4294901760
    %605 = vmatpush.msra.mxu0 %v604
    %v606 = vand.u32 %v56, 4294901760
    %607 = vmatmul.f32.gmra.mxu0 %v606
    %v608 = vpop.f32.mrf.mxu0
    %v609 = vadd.f32 %v572, %v608
    %v610 = vand.u32 %v59, 4294901760
    %611 = vmatmul.f32.gmra.mxu0 %v610
    %v612 = vpop.f32.mrf.mxu0
    %v613 = vadd.f32 %v576, %v612
    %v614 = vand.u32 %v62, 4294901760
    %615 = vmatmul.f32.gmra.mxu0 %v614
    %v616 = vpop.f32.mrf.mxu0
    %v617 = vadd.f32 %v580, %v616
    %v618 = vand.u32 %v65, 4294901760
    %619 = vmatmul.f32.gmra.mxu0 %v618
    %v620 = vpop.f32.mrf.mxu0
    %v621 = vadd.f32 %v584, %v620
    %622 = vdwg.mxu0
    %v623 = vtanh.pop %v331
    %v624 = vtanh.pop %v609
    %v625 = vtanh.pop %v335
    %v626 = vtanh.pop %v613
    %v627 = vtanh.pop %v339
    %v628 = vtanh.pop %v617
    %v629 = vtanh.pop %v343
    %v630 = vtanh.pop %v621
    %v631 = vld [vmem:[%s3] sm:$0xff]
    %v632 = vld [vmem:[%s3 + $0x8] sm:$0xff]
    %v633 = vld [vmem:[%s3 + $0x10] sm:$0xff]
    %v634 = vld [vmem:[%s3 + $0x18] sm:$0xff]
    %v635 = vld [vmem:[%s3 + $0x20] sm:$0xff]
    %v636 = vld [vmem:[%s3 + $0x28] sm:$0xff]
    %v637 = vld [vmem:[%s3 + $0x30] sm:$0xff]
    %v638 = vld [vmem:[%s3 + $0x38] sm:$0xff]
    %639 = vmatpush.xpose.msra.mxu0 0.0
    %640 = vmatpush.xpose.msra.mxu0 0.0
    %641 = vmatpush.xpose.msra.mxu0 0.0
    %642 = vmatpush.xpose.msra.mxu0 0.0
    %643 = vmatpush.xpose.msra.mxu0 0.0
    %644 = vmatpush.xpose.msra.mxu0 0.0
    %645 = vmatpush.xpose.msra.mxu0 0.0
    %646 = vmatpush.xpose.msra.mxu0 0.0
    %647 = vmatpush.xpose.msra.mxu0 0.0
    %648 = vmatpush.xpose.msra.mxu0 0.0
    %649 = vmatpush.xpose.msra.mxu0 0.0
    %650 = vmatpush.xpose.msra.mxu0 0.0
    %v651 = vand.u32 %v629, 4294901760
    %652 = vmatpush.xpose.msra.mxu0 %v651
    %v653 = vand.u32 %v627, 4294901760
    %654 = vmatpush.xpose.msra.mxu0 %v653
    %v655 = vand.u32 %v625, 4294901760
    %656 = vmatpush.xpose.msra.mxu0 %v655
    %v657 = vand.u32 %v623, 4294901760
    %658 = vmatpush.xpose.msra.mxu0 %v657
    %v659 = vand.u32 %v631, 4294901760
    %v660 = vsub.f32 %v631, %v659
    %v661 = vand.u32 %v660, 4294901760
    %v662 = vsub.f32 %v660, %v661
    %v663 = vand.u32 %v662, 4294901760
    %664 = vmatmul.f32.gmra.mxu0 %v663
    %v665 = vpop.f32.mrf.mxu0
    %v666 = vadd.f32 0.0, %v665
    %v667 = vand.u32 %v633, 4294901760
    %v668 = vsub.f32 %v633, %v667
    %v669 = vand.u32 %v668, 4294901760
    %v670 = vsub.f32 %v668, %v669
    %v671 = vand.u32 %v670, 4294901760
    %672 = vmatmul.f32.gmra.mxu0 %v671
    %v673 = vpop.f32.mrf.mxu0
    %v674 = vadd.f32 0.0, %v673
    %v675 = vand.u32 %v635, 4294901760
    %v676 = vsub.f32 %v635, %v675
    %v677 = vand.u32 %v676, 4294901760
    %v678 = vsub.f32 %v676, %v677
    %v679 = vand.u32 %v678, 4294901760
    %680 = vmatmul.f32.gmra.mxu0 %v679
    %v681 = vpop.f32.mrf.mxu0
    %v682 = vadd.f32 0.0, %v681
    %v683 = vand.u32 %v637, 4294901760
    %v684 = vsub.f32 %v637, %v683
    %v685 = vand.u32 %v684, 4294901760
    %v686 = vsub.f32 %v684, %v685
    %v687 = vand.u32 %v686, 4294901760
    %688 = vmatmul.f32.gmra.mxu0 %v687
    %v689 = vpop.f32.mrf.mxu0
    %v690 = vadd.f32 0.0, %v689
    %691 = vdwg.mxu0
    %692 = vmatpush.xpose.msra.mxu0 0.0
    %693 = vmatpush.xpose.msra.mxu0 0.0
    %694 = vmatpush.xpose.msra.mxu0 0.0
    %695 = vmatpush.xpose.msra.mxu0 0.0
    %696 = vmatpush.xpose.msra.mxu0 0.0
    %697 = vmatpush.xpose.msra.mxu0 0.0
    %698 = vmatpush.xpose.msra.mxu0 0.0
    %699 = vmatpush.xpose.msra.mxu0 0.0
    %700 = vmatpush.xpose.msra.mxu0 0.0
    %701 = vmatpush.xpose.msra.mxu0 0.0
    %702 = vmatpush.xpose.msra.mxu0 0.0
    %703 = vmatpush.xpose.msra.mxu0 0.0
    %v704 = vand.u32 %v629, 4294901760
    %v705 = vsub.f32 %v629, %v704
    %v706 = vand.u32 %v705, 4294901760
    %v707 = vsub.f32 %v705, %v706
    %v708 = vand.u32 %v707, 4294901760
    %709 = vmatpush.xpose.msra.mxu0 %v708
    %v710 = vand.u32 %v627, 4294901760
    %v711 = vsub.f32 %v627, %v710
    %v712 = vand.u32 %v711, 4294901760
    %v713 = vsub.f32 %v711, %v712
    %v714 = vand.u32 %v713, 4294901760
    %715 = vmatpush.xpose.msra.mxu0 %v714
    %v716 = vand.u32 %v625, 4294901760
    %v717 = vsub.f32 %v625, %v716
    %v718 = vand.u32 %v717, 4294901760
    %v719 = vsub.f32 %v717, %v718
    %v720 = vand.u32 %v719, 4294901760
    %721 = vmatpush.xpose.msra.mxu0 %v720
    %v722 = vand.u32 %v623, 4294901760
    %v723 = vsub.f32 %v623, %v722
    %v724 = vand.u32 %v723, 4294901760
    %v725 = vsub.f32 %v723, %v724
    %v726 = vand.u32 %v725, 4294901760
    %727 = vmatpush.xpose.msra.mxu0 %v726
    %v728 = vand.u32 %v631, 4294901760
    %729 = vmatmul.f32.gmra.mxu0 %v728
    %v730 = vpop.f32.mrf.mxu0
    %v731 = vadd.f32 %v666, %v730
    %v732 = vand.u32 %v633, 4294901760
    %733 = vmatmul.f32.gmra.mxu0 %v732
    %v734 = vpop.f32.mrf.mxu0
    %v735 = vadd.f32 %v674, %v734
    %v736 = vand.u32 %v635, 4294901760
    %737 = vmatmul.f32.gmra.mxu0 %v736
    %v738 = vpop.f32.mrf.mxu0
    %v739 = vadd.f32 %v682, %v738
    %v740 = vand.u32 %v637, 4294901760
    %741 = vmatmul.f32.gmra.mxu0 %v740
    %v742 = vpop.f32.mrf.mxu0
    %v743 = vadd.f32 %v690, %v742
    %744 = vdwg.mxu0
    %745 = vmatpush.xpose.msra.mxu0 0.0
    %746 = vmatpush.xpose.msra.mxu0 0.0
    %747 = vmatpush.xpose.msra.mxu0 0.0
    %748 = vmatpush.xpose.msra.mxu0 0.0
    %749 = vmatpush.xpose.msra.mxu0 0.0
    %750 = vmatpush.xpose.msra.mxu0 0.0
    %751 = vmatpush.xpose.msra.mxu0 0.0
    %752 = vmatpush.xpose.msra.mxu0 0.0
    %753 = vmatpush.xpose.msra.mxu0 0.0
    %754 = vmatpush.xpose.msra.mxu0 0.0
    %755 = vmatpush.xpose.msra.mxu0 0.0
    %756 = vmatpush.xpose.msra.mxu0 0.0
    %v757 = vand.u32 %v629, 4294901760
    %v758 = vsub.f32 %v629, %v757
    %759 = vmatpush.xpose.msra.mxu0 %v758
    %v760 = vand.u32 %v627, 4294901760
    %v761 = vsub.f32 %v627, %v760
    %762 = vmatpush.xpose.msra.mxu0 %v761
    %v763 = vand.u32 %v625, 4294901760
    %v764 = vsub.f32 %v625, %v763
    %765 = vmatpush.xpose.msra.mxu0 %v764
    %v766 = vand.u32 %v623, 4294901760
    %v767 = vsub.f32 %v623, %v766
    %768 = vmatpush.xpose.msra.mxu0 %v767
    %v769 = vand.u32 %v631, 4294901760
    %v770 = vsub.f32 %v631, %v769
    %771 = vmatmul.f32.gmra.mxu0 %v770
    %v772 = vpop.f32.mrf.mxu0
    %v773 = vadd.f32 %v731, %v772
    %v774 = vand.u32 %v633, 4294901760
    %v775 = vsub.f32 %v633, %v774
    %776 = vmatmul.f32.gmra.mxu0 %v775
    %v777 = vpop.f32.mrf.mxu0
    %v778 = vadd.f32 %v735, %v777
    %v779 = vand.u32 %v635, 4294901760
    %v780 = vsub.f32 %v635, %v779
    %781 = vmatmul.f32.gmra.mxu0 %v780
    %v782 = vpop.f32.mrf.mxu0
    %v783 = vadd.f32 %v739, %v782
    %v784 = vand.u32 %v637, 4294901760
    %v785 = vsub.f32 %v637, %v784
    %786 = vmatmul.f32.gmra.mxu0 %v785
    %v787 = vpop.f32.mrf.mxu0
    %v788 = vadd.f32 %v743, %v787
    %789 = vdwg.mxu0
    %790 = vmatpush.xpose.msra.mxu0 0.0
    %791 = vmatpush.xpose.msra.mxu0 0.0
    %792 = vmatpush.xpose.msra.mxu0 0.0
    %793 = vmatpush.xpose.msra.mxu0 0.0
    %794 = vmatpush.xpose.msra.mxu0 0.0
    %795 = vmatpush.xpose.msra.mxu0 0.0
    %796 = vmatpush.xpose.msra.mxu0 0.0
    %797 = vmatpush.xpose.msra.mxu0 0.0
    %798 = vmatpush.xpose.msra.mxu0 0.0
    %799 = vmatpush.xpose.msra.mxu0 0.0
    %800 = vmatpush.xpose.msra.mxu0 0.0
    %801 = vmatpush.xpose.msra.mxu0 0.0
    %v802 = vand.u32 %v629, 4294901760
    %803 = vmatpush.xpose.msra.mxu0 %v802
    %v804 = vand.u32 %v627, 4294901760
    %805 = vmatpush.xpose.msra.mxu0 %v804
    %v806 = vand.u32 %v625, 4294901760
    %807 = vmatpush.xpose.msra.mxu0 %v806
    %v808 = vand.u32 %v623, 4294901760
    %809 = vmatpush.xpose.msra.mxu0 %v808
    %v810 = vand.u32 %v631, 4294901760
    %v811 = vsub.f32 %v631, %v810
    %v812 = vand.u32 %v811, 4294901760
    %813 = vmatmul.f32.gmra.mxu0 %v812
    %v814 = vpop.f32.mrf.mxu0
    %v815 = vadd.f32 %v773, %v814
    %v816 = vand.u32 %v633, 4294901760
    %v817 = vsub.f32 %v633, %v816
    %v818 = vand.u32 %v817, 4294901760
    %819 = vmatmul.f32.gmra.mxu0 %v818
    %v820 = vpop.f32.mrf.mxu0
    %v821 = vadd.f32 %v778, %v820
    %v822 = vand.u32 %v635, 4294901760
    %v823 = vsub.f32 %v635, %v822
    %v824 = vand.u32 %v823, 4294901760
    %825 = vmatmul.f32.gmra.mxu0 %v824
    %v826 = vpop.f32.mrf.mxu0
    %v827 = vadd.f32 %v783, %v826
    %v828 = vand.u32 %v637, 4294901760
    %v829 = vsub.f32 %v637, %v828
    %v830 = vand.u32 %v829, 4294901760
    %831 = vmatmul.f32.gmra.mxu0 %v830
    %v832 = vpop.f32.mrf.mxu0
    %v833 = vadd.f32 %v788, %v832
    %834 = vdwg.mxu0
    %835 = vmatpush.xpose.msra.mxu0 0.0
    %836 = vmatpush.xpose.msra.mxu0 0.0
    %837 = vmatpush.xpose.msra.mxu0 0.0
    %838 = vmatpush.xpose.msra.mxu0 0.0
    %839 = vmatpush.xpose.msra.mxu0 0.0
    %840 = vmatpush.xpose.msra.mxu0 0.0
    %841 = vmatpush.xpose.msra.mxu0 0.0
    %842 = vmatpush.xpose.msra.mxu0 0.0
    %843 = vmatpush.xpose.msra.mxu0 0.0
    %844 = vmatpush.xpose.msra.mxu0 0.0
    %845 = vmatpush.xpose.msra.mxu0 0.0
    %846 = vmatpush.xpose.msra.mxu0 0.0
    %v847 = vand.u32 %v629, 4294901760
    %v848 = vsub.f32 %v629, %v847
    %v849 = vand.u32 %v848, 4294901760
    %850 = vmatpush.xpose.msra.mxu0 %v849
    %v851 = vand.u32 %v627, 4294901760
    %v852 = vsub.f32 %v627, %v851
    %v853 = vand.u32 %v852, 4294901760
    %854 = vmatpush.xpose.msra.mxu0 %v853
    %v855 = vand.u32 %v625, 4294901760
    %v856 = vsub.f32 %v625, %v855
    %v857 = vand.u32 %v856, 4294901760
    %858 = vmatpush.xpose.msra.mxu0 %v857
    %v859 = vand.u32 %v623, 4294901760
    %v860 = vsub.f32 %v623, %v859
    %v861 = vand.u32 %v860, 4294901760
    %862 = vmatpush.xpose.msra.mxu0 %v861
    %v863 = vand.u32 %v631, 4294901760
    %864 = vmatmul.f32.gmra.mxu0 %v863
    %v865 = vpop.f32.mrf.mxu0
    %v866 = vadd.f32 %v815, %v865
    %v867 = vand.u32 %v633, 4294901760
    %868 = vmatmul.f32.gmra.mxu0 %v867
    %v869 = vpop.f32.mrf.mxu0
    %v870 = vadd.f32 %v821, %v869
    %v871 = vand.u32 %v635, 4294901760
    %872 = vmatmul.f32.gmra.mxu0 %v871
    %v873 = vpop.f32.mrf.mxu0
    %v874 = vadd.f32 %v827, %v873
    %v875 = vand.u32 %v637, 4294901760
    %876 = vmatmul.f32.gmra.mxu0 %v875
    %v877 = vpop.f32.mrf.mxu0
    %v878 = vadd.f32 %v833, %v877
    %879 = vdwg.mxu0
    %880 = vmatpush.xpose.msra.mxu0 0.0
    %881 = vmatpush.xpose.msra.mxu0 0.0
    %882 = vmatpush.xpose.msra.mxu0 0.0
    %883 = vmatpush.xpose.msra.mxu0 0.0
    %884 = vmatpush.xpose.msra.mxu0 0.0
    %885 = vmatpush.xpose.msra.mxu0 0.0
    %886 = vmatpush.xpose.msra.mxu0 0.0
    %887 = vmatpush.xpose.msra.mxu0 0.0
    %888 = vmatpush.xpose.msra.mxu0 0.0
    %889 = vmatpush.xpose.msra.mxu0 0.0
    %890 = vmatpush.xpose.msra.mxu0 0.0
    %891 = vmatpush.xpose.msra.mxu0 0.0
    %v892 = vand.u32 %v629, 4294901760
    %893 = vmatpush.xpose.msra.mxu0 %v892
    %v894 = vand.u32 %v627, 4294901760
    %895 = vmatpush.xpose.msra.mxu0 %v894
    %v896 = vand.u32 %v625, 4294901760
    %897 = vmatpush.xpose.msra.mxu0 %v896
    %v898 = vand.u32 %v623, 4294901760
    %899 = vmatpush.xpose.msra.mxu0 %v898
    %v900 = vand.u32 %v631, 4294901760
    %901 = vmatmul.f32.gmra.mxu0 %v900
    %v902 = vpop.f32.mrf.mxu0
    %v903 = vadd.f32 %v866, %v902
    %v904 = vand.u32 %v633, 4294901760
    %905 = vmatmul.f32.gmra.mxu0 %v904
    %v906 = vpop.f32.mrf.mxu0
    %v907 = vadd.f32 %v870, %v906
    %v908 = vand.u32 %v635, 4294901760
    %909 = vmatmul.f32.gmra.mxu0 %v908
    %v910 = vpop.f32.mrf.mxu0
    %v911 = vadd.f32 %v874, %v910
    %v912 = vand.u32 %v637, 4294901760
    %913 = vmatmul.f32.gmra.mxu0 %v912
    %v914 = vpop.f32.mrf.mxu0
    %v915 = vadd.f32 %v878, %v914
    %916 = vdwg.mxu0
    %917 = vmatpush.xpose.msra.mxu0 0.0
    %918 = vmatpush.xpose.msra.mxu0 0.0
    %919 = vmatpush.xpose.msra.mxu0 0.0
    %920 = vmatpush.xpose.msra.mxu0 0.0
    %921 = vmatpush.xpose.msra.mxu0 0.0
    %922 = vmatpush.xpose.msra.mxu0 0.0
    %923 = vmatpush.xpose.msra.mxu0 0.0
    %924 = vmatpush.xpose.msra.mxu0 0.0
    %925 = vmatpush.xpose.msra.mxu0 0.0
    %926 = vmatpush.xpose.msra.mxu0 0.0
    %927 = vmatpush.xpose.msra.mxu0 0.0
    %928 = vmatpush.xpose.msra.mxu0 0.0
    %v929 = vand.u32 %v630, 4294901760
    %930 = vmatpush.xpose.msra.mxu0 %v929
    %v931 = vand.u32 %v628, 4294901760
    %932 = vmatpush.xpose.msra.mxu0 %v931
    %v933 = vand.u32 %v626, 4294901760
    %934 = vmatpush.xpose.msra.mxu0 %v933
    %v935 = vand.u32 %v624, 4294901760
    %936 = vmatpush.xpose.msra.mxu0 %v935
    %v937 = vand.u32 %v632, 4294901760
    %v938 = vsub.f32 %v632, %v937
    %v939 = vand.u32 %v938, 4294901760
    %v940 = vsub.f32 %v938, %v939
    %v941 = vand.u32 %v940, 4294901760
    %942 = vmatmul.f32.gmra.mxu0 %v941
    %v943 = vpop.f32.mrf.mxu0
    %v944 = vadd.f32 %v903, %v943
    %v945 = vand.u32 %v634, 4294901760
    %v946 = vsub.f32 %v634, %v945
    %v947 = vand.u32 %v946, 4294901760
    %v948 = vsub.f32 %v946, %v947
    %v949 = vand.u32 %v948, 4294901760
    %950 = vmatmul.f32.gmra.mxu0 %v949
    %v951 = vpop.f32.mrf.mxu0
    %v952 = vadd.f32 %v907, %v951
    %v953 = vand.u32 %v636, 4294901760
    %v954 = vsub.f32 %v636, %v953
    %v955 = vand.u32 %v954, 4294901760
    %v956 = vsub.f32 %v954, %v955
    %v957 = vand.u32 %v956, 4294901760
    %958 = vmatmul.f32.gmra.mxu0 %v957
    %v959 = vpop.f32.mrf.mxu0
    %v960 = vadd.f32 %v911, %v959
    %v961 = vand.u32 %v638, 4294901760
    %v962 = vsub.f32 %v638, %v961
    %v963 = vand.u32 %v962, 4294901760
    %v964 = vsub.f32 %v962, %v963
    %v965 = vand.u32 %v964, 4294901760
    %966 = vmatmul.f32.gmra.mxu0 %v965
    %v967 = vpop.f32.mrf.mxu0
    %v968 = vadd.f32 %v915, %v967
    %969 = vdwg.mxu0
    %970 = vmatpush.xpose.msra.mxu0 0.0
    %971 = vmatpush.xpose.msra.mxu0 0.0
    %972 = vmatpush.xpose.msra.mxu0 0.0
    %973 = vmatpush.xpose.msra.mxu0 0.0
    %974 = vmatpush.xpose.msra.mxu0 0.0
    %975 = vmatpush.xpose.msra.mxu0 0.0
    %976 = vmatpush.xpose.msra.mxu0 0.0
    %977 = vmatpush.xpose.msra.mxu0 0.0
    %978 = vmatpush.xpose.msra.mxu0 0.0
    %979 = vmatpush.xpose.msra.mxu0 0.0
    %980 = vmatpush.xpose.msra.mxu0 0.0
    %981 = vmatpush.xpose.msra.mxu0 0.0
    %v982 = vand.u32 %v630, 4294901760
    %v983 = vsub.f32 %v630, %v982
    %v984 = vand.u32 %v983, 4294901760
    %v985 = vsub.f32 %v983, %v984
    %v986 = vand.u32 %v985, 4294901760
    %987 = vmatpush.xpose.msra.mxu0 %v986
    %v988 = vand.u32 %v628, 4294901760
    %v989 = vsub.f32 %v628, %v988
    %v990 = vand.u32 %v989, 4294901760
    %v991 = vsub.f32 %v989, %v990
    %v992 = vand.u32 %v991, 4294901760
    %993 = vmatpush.xpose.msra.mxu0 %v992
    %v994 = vand.u32 %v626, 4294901760
    %v995 = vsub.f32 %v626, %v994
    %v996 = vand.u32 %v995, 4294901760
    %v997 = vsub.f32 %v995, %v996
    %v998 = vand.u32 %v997, 4294901760
    %999 = vmatpush.xpose.msra.mxu0 %v998
    %v1000 = vand.u32 %v624, 4294901760
    %v1001 = vsub.f32 %v624, %v1000
    %v1002 = vand.u32 %v1001, 4294901760
    %v1003 = vsub.f32 %v1001, %v1002
    %v1004 = vand.u32 %v1003, 4294901760
    %1005 = vmatpush.xpose.msra.mxu0 %v1004
    %v1006 = vand.u32 %v632, 4294901760
    %1007 = vmatmul.f32.gmra.mxu0 %v1006
    %v1008 = vpop.f32.mrf.mxu0
    %v1009 = vadd.f32 %v944, %v1008
    %v1010 = vand.u32 %v634, 4294901760
    %1011 = vmatmul.f32.gmra.mxu0 %v1010
    %v1012 = vpop.f32.mrf.mxu0
    %v1013 = vadd.f32 %v952, %v1012
    %v1014 = vand.u32 %v636, 4294901760
    %1015 = vmatmul.f32.gmra.mxu0 %v1014
    %v1016 = vpop.f32.mrf.mxu0
    %v1017 = vadd.f32 %v960, %v1016
    %v1018 = vand.u32 %v638, 4294901760
    %1019 = vmatmul.f32.gmra.mxu0 %v1018
    %v1020 = vpop.f32.mrf.mxu0
    %v1021 = vadd.f32 %v968, %v1020
    %1022 = vdwg.mxu0
    %1023 = vmatpush.xpose.msra.mxu0 0.0
    %1024 = vmatpush.xpose.msra.mxu0 0.0
    %1025 = vmatpush.xpose.msra.mxu0 0.0
    %1026 = vmatpush.xpose.msra.mxu0 0.0
    %1027 = vmatpush.xpose.msra.mxu0 0.0
    %1028 = vmatpush.xpose.msra.mxu0 0.0
    %1029 = vmatpush.xpose.msra.mxu0 0.0
    %1030 = vmatpush.xpose.msra.mxu0 0.0
    %1031 = vmatpush.xpose.msra.mxu0 0.0
    %1032 = vmatpush.xpose.msra.mxu0 0.0
    %1033 = vmatpush.xpose.msra.mxu0 0.0
    %1034 = vmatpush.xpose.msra.mxu0 0.0
    %v1035 = vand.u32 %v630, 4294901760
    %v1036 = vsub.f32 %v630, %v1035
    %1037 = vmatpush.xpose.msra.mxu0 %v1036
    %v1038 = vand.u32 %v628, 4294901760
    %v1039 = vsub.f32 %v628, %v1038
    %1040 = vmatpush.xpose.msra.mxu0 %v1039
    %v1041 = vand.u32 %v626, 4294901760
    %v1042 = vsub.f32 %v626, %v1041
    %1043 = vmatpush.xpose.msra.mxu0 %v1042
    %v1044 = vand.u32 %v624, 4294901760
    %v1045 = vsub.f32 %v624, %v1044
    %1046 = vmatpush.xpose.msra.mxu0 %v1045
    %v1047 = vand.u32 %v632, 4294901760
    %v1048 = vsub.f32 %v632, %v1047
    %1049 = vmatmul.f32.gmra.mxu0 %v1048
    %v1050 = vpop.f32.mrf.mxu0
    %v1051 = vadd.f32 %v1009, %v1050
    %v1052 = vand.u32 %v634, 4294901760
    %v1053 = vsub.f32 %v634, %v1052
    %1054 = vmatmul.f32.gmra.mxu0 %v1053
    %v1055 = vpop.f32.mrf.mxu0
    %v1056 = vadd.f32 %v1013, %v1055
    %v1057 = vand.u32 %v636, 4294901760
    %v1058 = vsub.f32 %v636, %v1057
    %1059 = vmatmul.f32.gmra.mxu0 %v1058
    %v1060 = vpop.f32.mrf.mxu0
    %v1061 = vadd.f32 %v1017, %v1060
    %v1062 = vand.u32 %v638, 4294901760
    %v1063 = vsub.f32 %v638, %v1062
    %1064 = vmatmul.f32.gmra.mxu0 %v1063
    %v1065 = vpop.f32.mrf.mxu0
    %v1066 = vadd.f32 %v1021, %v1065
    %1067 = vdwg.mxu0
    %1068 = vmatpush.xpose.msra.mxu0 0.0
    %1069 = vmatpush.xpose.msra.mxu0 0.0
    %1070 = vmatpush.xpose.msra.mxu0 0.0
    %1071 = vmatpush.xpose.msra.mxu0 0.0
    %1072 = vmatpush.xpose.msra.mxu0 0.0
    %1073 = vmatpush.xpose.msra.mxu0 0.0
    %1074 = vmatpush.xpose.msra.mxu0 0.0
    %1075 = vmatpush.xpose.msra.mxu0 0.0
    %1076 = vmatpush.xpose.msra.mxu0 0.0
    %1077 = vmatpush.xpose.msra.mxu0 0.0
    %1078 = vmatpush.xpose.msra.mxu0 0.0
    %1079 = vmatpush.xpose.msra.mxu0 0.0
    %v1080 = vand.u32 %v630, 4294901760
    %1081 = vmatpush.xpose.msra.mxu0 %v1080
    %v1082 = vand.u32 %v628, 4294901760
    %1083 = vmatpush.xpose.msra.mxu0 %v1082
    %v1084 = vand.u32 %v626, 4294901760
    %1085 = vmatpush.xpose.msra.mxu0 %v1084
    %v1086 = vand.u32 %v624, 4294901760
    %1087 = vmatpush.xpose.msra.mxu0 %v1086
    %v1088 = vand.u32 %v632, 4294901760
    %v1089 = vsub.f32 %v632, %v1088
    %v1090 = vand.u32 %v1089, 4294901760
    %1091 = vmatmul.f32.gmra.mxu0 %v1090
    %v1092 = vpop.f32.mrf.mxu0
    %v1093 = vadd.f32 %v1051, %v1092
    %v1094 = vand.u32 %v634, 4294901760
    %v1095 = vsub.f32 %v634, %v1094
    %v1096 = vand.u32 %v1095, 4294901760
    %1097 = vmatmul.f32.gmra.mxu0 %v1096
    %v1098 = vpop.f32.mrf.mxu0
    %v1099 = vadd.f32 %v1056, %v1098
    %v1100 = vand.u32 %v636, 4294901760
    %v1101 = vsub.f32 %v636, %v1100
    %v1102 = vand.u32 %v1101, 4294901760
    %1103 = vmatmul.f32.gmra.mxu0 %v1102
    %v1104 = vpop.f32.mrf.mxu0
    %v1105 = vadd.f32 %v1061, %v1104
    %v1106 = vand.u32 %v638, 4294901760
    %v1107 = vsub.f32 %v638, %v1106
    %v1108 = vand.u32 %v1107, 4294901760
    %1109 = vmatmul.f32.gmra.mxu0 %v1108
    %v1110 = vpop.f32.mrf.mxu0
    %v1111 = vadd.f32 %v1066, %v1110
    %1112 = vdwg.mxu0
    %1113 = vmatpush.xpose.msra.mxu0 0.0
    %1114 = vmatpush.xpose.msra.mxu0 0.0
    %1115 = vmatpush.xpose.msra.mxu0 0.0
    %1116 = vmatpush.xpose.msra.mxu0 0.0
    %1117 = vmatpush.xpose.msra.mxu0 0.0
    %1118 = vmatpush.xpose.msra.mxu0 0.0
    %1119 = vmatpush.xpose.msra.mxu0 0.0
    %1120 = vmatpush.xpose.msra.mxu0 0.0
    %1121 = vmatpush.xpose.msra.mxu0 0.0
    %1122 = vmatpush.xpose.msra.mxu0 0.0
    %1123 = vmatpush.xpose.msra.mxu0 0.0
    %1124 = vmatpush.xpose.msra.mxu0 0.0
    %v1125 = vand.u32 %v630, 4294901760
    %v1126 = vsub.f32 %v630, %v1125
    %v1127 = vand.u32 %v1126, 4294901760
    %1128 = vmatpush.xpose.msra.mxu0 %v1127
    %v1129 = vand.u32 %v628, 4294901760
    %v1130 = vsub.f32 %v628, %v1129
    %v1131 = vand.u32 %v1130, 4294901760
    %1132 = vmatpush.xpose.msra.mxu0 %v1131
    %v1133 = vand.u32 %v626, 4294901760
    %v1134 = vsub.f32 %v626, %v1133
    %v1135 = vand.u32 %v1134, 4294901760
    %1136 = vmatpush.xpose.msra.mxu0 %v1135
    %v1137 = vand.u32 %v624, 4294901760
    %v1138 = vsub.f32 %v624, %v1137
    %v1139 = vand.u32 %v1138, 4294901760
    %1140 = vmatpush.xpose.msra.mxu0 %v1139
    %v1141 = vand.u32 %v632, 4294901760
    %1142 = vmatmul.f32.gmra.mxu0 %v1141
    %v1143 = vpop.f32.mrf.mxu0
    %v1144 = vadd.f32 %v1093, %v1143
    %v1145 = vand.u32 %v634, 4294901760
    %1146 = vmatmul.f32.gmra.mxu0 %v1145
    %v1147 = vpop.f32.mrf.mxu0
    %v1148 = vadd.f32 %v1099, %v1147
    %v1149 = vand.u32 %v636, 4294901760
    %1150 = vmatmul.f32.gmra.mxu0 %v1149
    %v1151 = vpop.f32.mrf.mxu0
    %v1152 = vadd.f32 %v1105, %v1151
    %v1153 = vand.u32 %v638, 4294901760
    %1154 = vmatmul.f32.gmra.mxu0 %v1153
    %v1155 = vpop.f32.mrf.mxu0
    %v1156 = vadd.f32 %v1111, %v1155
    %1157 = vdwg.mxu0
    %1158 = vmatpush.xpose.msra.mxu0 0.0
    %1159 = vmatpush.xpose.msra.mxu0 0.0
    %1160 = vmatpush.xpose.msra.mxu0 0.0
    %1161 = vmatpush.xpose.msra.mxu0 0.0
    %1162 = vmatpush.xpose.msra.mxu0 0.0
    %1163 = vmatpush.xpose.msra.mxu0 0.0
    %1164 = vmatpush.xpose.msra.mxu0 0.0
    %1165 = vmatpush.xpose.msra.mxu0 0.0
    %1166 = vmatpush.xpose.msra.mxu0 0.0
    %1167 = vmatpush.xpose.msra.mxu0 0.0
    %1168 = vmatpush.xpose.msra.mxu0 0.0
    %1169 = vmatpush.xpose.msra.mxu0 0.0
    %v1170 = vand.u32 %v630, 4294901760
    %1171 = vmatpush.xpose.msra.mxu0 %v1170
    %v1172 = vand.u32 %v628, 4294901760
    %1173 = vmatpush.xpose.msra.mxu0 %v1172
    %v1174 = vand.u32 %v626, 4294901760
    %1175 = vmatpush.xpose.msra.mxu0 %v1174
    %v1176 = vand.u32 %v624, 4294901760
    %1177 = vmatpush.xpose.msra.mxu0 %v1176
    %v1178 = vand.u32 %v632, 4294901760
    %1179 = vmatmul.f32.gmra.mxu0 %v1178
    %v1180 = vpop.f32.mrf.mxu0
    %v1181 = vadd.f32 %v1144, %v1180
    %v1182 = vand.u32 %v634, 4294901760
    %1183 = vmatmul.f32.gmra.mxu0 %v1182
    %v1184 = vpop.f32.mrf.mxu0
    %v1185 = vadd.f32 %v1148, %v1184
    %v1186 = vand.u32 %v636, 4294901760
    %1187 = vmatmul.f32.gmra.mxu0 %v1186
    %v1188 = vpop.f32.mrf.mxu0
    %v1189 = vadd.f32 %v1152, %v1188
    %v1190 = vand.u32 %v638, 4294901760
    %1191 = vmatmul.f32.gmra.mxu0 %v1190
    %v1192 = vpop.f32.mrf.mxu0
    %v1193 = vadd.f32 %v1156, %v1192
    %1194 = vdwg.mxu0
    %v1195 = vtanh.pop %v1181
    %v1196 = vtanh.pop %v1185
    %v1197 = vtanh.pop %v1189
    %v1198 = vtanh.pop %v1193
    %1199 = vst.msk [vmem:[#allocation2] sm:$0xff] %vm54, %v1195
    %1200 = vst.msk [vmem:[#allocation2 + $0x8] sm:$0xff] %vm54, %v1196
    %1201 = vst.msk [vmem:[#allocation2 + $0x10] sm:$0xff] %vm54, %v1197
    %1202 = vst.msk [vmem:[#allocation2 + $0x18] sm:$0xff] %vm54, %v1198
    // Predicated region
    $region18: #{lmu_cell_forward.1} parent=1 // pred_check
      _
    $region19: #{lmu_cell_forward.1} parent=1 // pred_check_branch
      %1204 = sbr.rel (0) target = $region21
    $region20: #{lmu_cell_forward.1} parent=1 // pred_region
      %1206 = vsyncadd [#allocation3], 0
      %s1207 = sshll.u32 [#allocation2], 4
      %s1208 = int_to_ptr.vmem [resolvable:$true] %s1207
      %s1209 = sshll.u32 %s4, 4
      %s1210 = int_to_ptr.hbm [resolvable:$true] %s1209
      %1215 = dma.vmem_to_hbm [thread:$0]  %s1208, 512, %s1210, [#allocation3], 128, 128, 8
    $region21: #{lmu_cell_forward.1} parent=1 // pred_fallthru
      _
    // Predicated region
    $region22: #{lmu_cell_forward.1} parent=1 // pred_check
      _
    $region23: #{lmu_cell_forward.1} parent=1 // pred_check_branch
      %1217 = sbr.rel (0) target = $region25
    $region24: #{lmu_cell_forward.1} parent=1 // pred_region
      %1219 = dma.done [#allocation3], 512
    $region25: #{lmu_cell_forward.1} parent=1 // pred_fallthru
      _
    %1220 = vsyncpa [#allocation3], 1

</llo_original>
